<compile_context>
chip_gen: v7x
topology: tpu7x:2x2x1
jax: 0.10.0
libtpu: 0.0.40
codegen_flags: <defaults>
</compile_context>

<pallas_src>
import jax
import jax.numpy as jnp
from jax.experimental import pallas as pl
from jax.experimental.pallas import tpu as pltpu


def _round_up(x, m):
    return (x + m - 1) // m * m


def residual_mlp_kernel(x_ref, w1_ref, b1_ref, w2_ref, b2_ref, w3_ref, b3_ref,
                        out_ref):
    cdt = w1_ref.dtype
    x = x_ref[...].astype(cdt)                                    # (tm, in_dim)

    h1 = jnp.dot(x, w1_ref[...], preferred_element_type=jnp.float32)
    h1 = jnp.maximum(h1 + b1_ref[...], 0.0)                       # (tm, hidden) f32

    h2 = jnp.dot(h1.astype(cdt), w2_ref[...],                     # single cast of h1
                 preferred_element_type=jnp.float32)
    h2 = jnp.maximum(h2 + b2_ref[...], 0.0)                       # (tm, hidden) f32

    combined = (h2 + h1).astype(cdt)                              # residual, f32 add
    out = jnp.dot(combined, w3_ref[...], preferred_element_type=jnp.float32)
    out_ref[...] = (out + b3_ref[...]).astype(out_ref.dtype)      # (tm, 128) dense store


def residual_mlp(x, w1, b1, w2, b2, w3, b3, *,
                 compute_dtype=jnp.bfloat16, tm_cap=256):
    """Fused ResidualMLP forward pass."""
    B, in_dim = x.shape
    hidden = w1.shape[1]
    out_dim = w3.shape[1]
    out_dtype = x.dtype
    cdt = jnp.dtype(compute_dtype)

    # Weights in compute dtype (bf16 by default -> native MXU path, half the
    # weight HBM bytes); biases stay f32; accumulation is f32.
    w1_c = w1.astype(cdt)
    w2_c = w2.astype(cdt)
    b1_r = b1.reshape(1, hidden).astype(jnp.float32)
    b2_r = b2.reshape(1, hidden).astype(jnp.float32)

    # Lane-dense output: zero-pad W3 / b3 to a 128-lane multiple.
    n_pad = _round_up(out_dim, 128)
    w3_c = jnp.pad(w3.astype(cdt), ((0, 0), (0, n_pad - out_dim)))
    b3_r = jnp.pad(b3.reshape(1, out_dim).astype(jnp.float32),
                   ((0, 0), (0, n_pad - out_dim)))

    # Batch tiling: tm is a sublane multiple (8 for f32, 16 for bf16 inputs),
    # capped at tm_cap.  grid = cdiv(B, tm); the boundary block is masked by
    # Pallas, so no wrapper-side batch padding is needed.
    x_sub = 8 * max(1, 4 // jnp.dtype(x.dtype).itemsize)
    o_sub = 8 * max(1, 4 // jnp.dtype(out_dtype).itemsize)
    sublane = max(x_sub, o_sub, 8)
    tm = _round_up(min(tm_cap, _round_up(B, sublane)), sublane)
    grid = (pl.cdiv(B, tm),)

    flops = 2 * B * (in_dim * hidden + hidden * hidden + hidden * out_dim)
    bytes_accessed = (
        B * in_dim * jnp.dtype(x.dtype).itemsize
        + (w1_c.size + w2_c.size + w3_c.size) * cdt.itemsize
        + (b1_r.size + b2_r.size + b3_r.size) * 4
        + B * n_pad * jnp.dtype(out_dtype).itemsize)

    # Weights/biases use constant index_maps -> fetched once, VMEM-resident
    # across all grid steps.
    # TODO(synk): if hidden grows into the thousands, add a K-axis reduction
    # grid for W2 and set vmem_limit_bytes explicitly (v7x has only 64 MiB
    # physical VMEM / 32 MiB scoped default vs 128 MiB on v5e/v6e; on v6e/v5e
    # prefer raising vmem_limit_bytes and keeping W2 resident).
    out = pl.pallas_call(
        residual_mlp_kernel,
        out_shape=jax.ShapeDtypeStruct((B, n_pad), out_dtype),
        grid_spec=pltpu.PrefetchScalarGridSpec(
            num_scalar_prefetch=0,
            grid=grid,
            in_specs=[
                pl.BlockSpec((tm, in_dim), lambda i: (i, 0)),       # x tile
                pl.BlockSpec((in_dim, hidden), lambda i: (0, 0)),   # W1 (resident)
                pl.BlockSpec((1, hidden), lambda i: (0, 0)),        # b1
                pl.BlockSpec((hidden, hidden), lambda i: (0, 0)),   # W2 (resident)
                pl.BlockSpec((1, hidden), lambda i: (0, 0)),        # b2
                pl.BlockSpec((hidden, n_pad), lambda i: (0, 0)),    # W3 padded (resident)
                pl.BlockSpec((1, n_pad), lambda i: (0, 0)),         # b3 padded
            ],
            out_specs=pl.BlockSpec((tm, n_pad), lambda i: (i, 0)),
        ),
        compiler_params=pltpu.CompilerParams(
            dimension_semantics=("parallel",)),
        cost_estimate=pl.CostEstimate(
            flops=flops, transcendentals=0, bytes_accessed=bytes_accessed),
    )(x, w1_c, b1_r, w2_c, b2_r, w3_c, b3_r)

    return out[:, :out_dim]


def residual_mlp_ref(x, w1, b1, w2, b2, w3, b3):
    h1 = jnp.maximum(jnp.dot(x, w1) + b1.reshape(1, -1), 0.0)
    h2 = jnp.maximum(jnp.dot(h1, w2) + b2.reshape(1, -1), 0.0)
    combined = h2 + h1
    return jnp.dot(combined, w3) + b3.reshape(1, -1)


if __name__ == "__main__":
    # Shapes consistent with the module: dim=4, embedding_dim=8, hidden=32
    # -> x_combined: (batch, 12)
    dim, emb_dim, hidden = 4, 8, 32
    in_dim = dim + emb_dim

    key = jax.random.PRNGKey(0)
    keys = jax.random.split(key, 7)
    # PyTorch nn.Linear weight (out,in) is stored here as its transpose (in,out).
    w1 = jax.random.normal(keys[1], (in_dim, hidden), dtype=jnp.float32) * 0.1
    b1 = jax.random.normal(keys[2], (hidden,), dtype=jnp.float32) * 0.1
    w2 = jax.random.normal(keys[3], (hidden, hidden), dtype=jnp.float32) * 0.1
    b2 = jax.random.normal(keys[4], (hidden,), dtype=jnp.float32) * 0.1
    w3 = jax.random.normal(keys[5], (hidden, dim), dtype=jnp.float32) * 0.1
    b3 = jax.random.normal(keys[6], (dim,), dtype=jnp.float32) * 0.1

    # 16: single aligned tile; 37: boundary-masked tile; 600: multi-step grid
    # (pipelined, masked last block, v7x megacore-shardable).
    for batch in (16, 37, 600):
        xkey = jax.random.fold_in(keys[0], batch)
        x = jax.random.normal(xkey, (batch, in_dim), dtype=jnp.float32)

        ref32 = residual_mlp_ref(x, w1, b1, w2, b2, w3, b3)

        # Default path: bf16 MXU operands, f32 accumulation.
        out_bf16 = jax.block_until_ready(residual_mlp(x, w1, b1, w2, b2, w3, b3))
        assert out_bf16.shape == (batch, dim)
        assert out_bf16.dtype == x.dtype
        assert jnp.allclose(out_bf16, ref32, atol=3e-2, rtol=3e-2), (
            float(jnp.max(jnp.abs(out_bf16 - ref32))))

        # Full-f32 path must match the reference tightly.
        out_f32 = jax.block_until_ready(
            residual_mlp(x, w1, b1, w2, b2, w3, b3, compute_dtype=jnp.float32))
        assert jnp.allclose(out_f32, ref32, atol=1e-5, rtol=1e-5), (
            float(jnp.max(jnp.abs(out_f32 - ref32))))

    print("KERNEL_OK")
</pallas_src>

<mosaic_0001>
module attributes {stable_mosaic.version = 11 : i64} {
  func.func @residual_mlp_kernel(%arg0: i32, %arg1: memref<16x12xf32, #tpu.memory_space<vmem>>, %arg2: memref<12x32xbf16, #tpu.memory_space<vmem>>, %arg3: memref<1x32xf32, #tpu.memory_space<vmem>>, %arg4: memref<32x32xbf16, #tpu.memory_space<vmem>>, %arg5: memref<1x32xf32, #tpu.memory_space<vmem>>, %arg6: memref<32x128xbf16, #tpu.memory_space<vmem>>, %arg7: memref<1x128xf32, #tpu.memory_space<vmem>>, %arg8: memref<16x128xf32, #tpu.memory_space<vmem>>) attributes {dimension_semantics = [#tpu.dimension_semantics<parallel>], iteration_bounds = array<i64: 1>, scalar_prefetch = 0 : i64, scratch_operands = 0 : i64, tpu.core_type = #tpu.core_type<tc>, window_params = [{transform_indices = @transform_0, window_bounds = array<i64: 16, 12>}, {pipeline_mode = #tpu.pipeline_mode<synchronous>, transform_indices = @transform_1, window_bounds = array<i64: 12, 32>}, {pipeline_mode = #tpu.pipeline_mode<synchronous>, transform_indices = @transform_2, window_bounds = array<i64: 1, 32>}, {pipeline_mode = #tpu.pipeline_mode<synchronous>, transform_indices = @transform_3, window_bounds = array<i64: 32, 32>}, {pipeline_mode = #tpu.pipeline_mode<synchronous>, transform_indices = @transform_4, window_bounds = array<i64: 1, 32>}, {pipeline_mode = #tpu.pipeline_mode<synchronous>, transform_indices = @transform_5, window_bounds = array<i64: 32, 128>}, {pipeline_mode = #tpu.pipeline_mode<synchronous>, transform_indices = @transform_6, window_bounds = array<i64: 1, 128>}, {transform_indices = @transform_7, window_bounds = array<i64: 16, 128>}]} {
    %c0 = arith.constant 0 : index
    %c0_0 = arith.constant 0 : index
    %0 = vector.load %arg1[%c0, %c0_0] : memref<16x12xf32, #tpu.memory_space<vmem>>, vector<16x12xf32>
    %1 = arith.truncf %0 : vector<16x12xf32> to vector<16x12xbf16>
    %c0_1 = arith.constant 0 : index
    %c0_2 = arith.constant 0 : index
    %2 = vector.load %arg2[%c0_1, %c0_2] : memref<12x32xbf16, #tpu.memory_space<vmem>>, vector<12x32xbf16>
    %cst = arith.constant dense<0.000000e+00> : vector<16x32xf32>
    %3 = tpu.matmul %1, %2, %cst {dimension_numbers = #tpu.dot_dimension_numbers<[1], [0], [0], [1], [0, 0, 1, 1], [], []>} : vector<16x12xbf16>, vector<12x32xbf16>, vector<16x32xf32> -> vector<16x32xf32>
    %c0_3 = arith.constant 0 : index
    %c0_4 = arith.constant 0 : index
    %4 = vector.load %arg3[%c0_3, %c0_4] : memref<1x32xf32, #tpu.memory_space<vmem>>, vector<1x32xf32>
    %5 = vector.broadcast %4 : vector<1x32xf32> to vector<16x32xf32>
    %6 = arith.addf %3, %5 : vector<16x32xf32>
    %cst_5 = arith.constant 0.000000e+00 : f32
    %7 = vector.broadcast %cst_5 : f32 to vector<16x32xf32>
    %8 = arith.maximumf %6, %7 : vector<16x32xf32>
    %9 = arith.truncf %8 : vector<16x32xf32> to vector<16x32xbf16>
    %c0_6 = arith.constant 0 : index
    %c0_7 = arith.constant 0 : index
    %10 = vector.load %arg4[%c0_6, %c0_7] : memref<32x32xbf16, #tpu.memory_space<vmem>>, vector<32x32xbf16>
    %cst_8 = arith.constant dense<0.000000e+00> : vector<16x32xf32>
    %11 = tpu.matmul %9, %10, %cst_8 {dimension_numbers = #tpu.dot_dimension_numbers<[1], [0], [0], [1], [0, 0, 1, 1], [], []>} : vector<16x32xbf16>, vector<32x32xbf16>, vector<16x32xf32> -> vector<16x32xf32>
    %c0_9 = arith.constant 0 : index
    %c0_10 = arith.constant 0 : index
    %12 = vector.load %arg5[%c0_9, %c0_10] : memref<1x32xf32, #tpu.memory_space<vmem>>, vector<1x32xf32>
    %13 = vector.broadcast %12 : vector<1x32xf32> to vector<16x32xf32>
    %14 = arith.addf %11, %13 : vector<16x32xf32>
    %cst_11 = arith.constant 0.000000e+00 : f32
    %15 = vector.broadcast %cst_11 : f32 to vector<16x32xf32>
    %16 = arith.maximumf %14, %15 : vector<16x32xf32>
    %17 = arith.addf %16, %8 : vector<16x32xf32>
    %18 = arith.truncf %17 : vector<16x32xf32> to vector<16x32xbf16>
    %c0_12 = arith.constant 0 : index
    %c0_13 = arith.constant 0 : index
    %19 = vector.load %arg6[%c0_12, %c0_13] : memref<32x128xbf16, #tpu.memory_space<vmem>>, vector<32x128xbf16>
    %cst_14 = arith.constant dense<0.000000e+00> : vector<16x128xf32>
    %20 = tpu.matmul %18, %19, %cst_14 {dimension_numbers = #tpu.dot_dimension_numbers<[1], [0], [0], [1], [0, 0, 1, 1], [], []>} : vector<16x32xbf16>, vector<32x128xbf16>, vector<16x128xf32> -> vector<16x128xf32>
    %c0_15 = arith.constant 0 : index
    %c0_16 = arith.constant 0 : index
    %21 = vector.load %arg7[%c0_15, %c0_16] : memref<1x128xf32, #tpu.memory_space<vmem>>, vector<1x128xf32>
    %22 = vector.broadcast %21 : vector<1x128xf32> to vector<16x128xf32>
    %23 = arith.addf %20, %22 : vector<16x128xf32>
    %c0_17 = arith.constant 0 : index
    %c0_18 = arith.constant 0 : index
    %24 = vector.load %arg8[%c0_17, %c0_18] : memref<16x128xf32, #tpu.memory_space<vmem>>, vector<16x128xf32>
    tpu.vector_store %arg8[%c0_17, %c0_18], %23 {strides = array<i32>} : memref<16x128xf32, #tpu.memory_space<vmem>>, vector<16x128xf32>,
    return
  }
  func.func @transform_0(%arg0: i32) -> (i32, i32) {
    %c0_i32 = arith.constant 0 : i32
    %c0_i32_0 = arith.constant 0 : i32
    return %arg0, %c0_i32 : i32, i32
  }
  func.func @transform_1(%arg0: i32) -> (i32, i32) {
    %c0_i32 = arith.constant 0 : i32
    %c0_i32_0 = arith.constant 0 : i32
    %c0_i32_1 = arith.constant 0 : i32
    return %c0_i32, %c0_i32_0 : i32, i32
  }
  func.func @transform_2(%arg0: i32) -> (i32, i32) {
    %c0_i32 = arith.constant 0 : i32
    %c0_i32_0 = arith.constant 0 : i32
    %c0_i32_1 = arith.constant 0 : i32
    return %c0_i32, %c0_i32_0 : i32, i32
  }
  func.func @transform_3(%arg0: i32) -> (i32, i32) {
    %c0_i32 = arith.constant 0 : i32
    %c0_i32_0 = arith.constant 0 : i32
    %c0_i32_1 = arith.constant 0 : i32
    return %c0_i32, %c0_i32_0 : i32, i32
  }
  func.func @transform_4(%arg0: i32) -> (i32, i32) {
    %c0_i32 = arith.constant 0 : i32
    %c0_i32_0 = arith.constant 0 : i32
    %c0_i32_1 = arith.constant 0 : i32
    return %c0_i32, %c0_i32_0 : i32, i32
  }
  func.func @transform_5(%arg0: i32) -> (i32, i32) {
    %c0_i32 = arith.constant 0 : i32
    %c0_i32_0 = arith.constant 0 : i32
    %c0_i32_1 = arith.constant 0 : i32
    return %c0_i32, %c0_i32_0 : i32, i32
  }
  func.func @transform_6(%arg0: i32) -> (i32, i32) {
    %c0_i32 = arith.constant 0 : i32
    %c0_i32_0 = arith.constant 0 : i32
    %c0_i32_1 = arith.constant 0 : i32
    return %c0_i32, %c0_i32_0 : i32, i32
  }
  func.func @transform_7(%arg0: i32) -> (i32, i32) {
    %c0_i32 = arith.constant 0 : i32
    %c0_i32_0 = arith.constant 0 : i32
    return %arg0, %c0_i32 : i32, i32
  }
}

</mosaic_0001>

<llo_original>
// kernel: tpu_custom_call.1
$region0: #{tpu_custom_call.1}
  #allocation0 [shape = 'u32[]', space=smem, size = 0x4, offset = 0x4, fixed_abs, tag = 'smem constant byte address 0x4 - core index']
  #allocation1 [shape = 'u32[144,128]{1,0:T(1,128)}', space=vmem, size = 0x12000, scoped, tag = 'internal scratch']
  %s0 = inlined_call_operand.hbm [shape: f32[16,12], index: 0, kind: input, shape index: {}]
  %s1 = inlined_call_operand.hbm [shape: bf16[12,32], index: 1, kind: input, shape index: {}]
  %s2 = inlined_call_operand.vmem [shape: f32[1,32], index: 2, kind: input, shape index: {}]
  %s3 = inlined_call_operand.hbm [shape: bf16[32,32], index: 3, kind: input, shape index: {}]
  %s4 = inlined_call_operand.vmem [shape: f32[1,32], index: 4, kind: input, shape index: {}]
  %s5 = inlined_call_operand.vmem [shape: bf16[32,128], index: 5, kind: input, shape index: {}]
  %s6 = inlined_call_operand.vmem [shape: f32[1,128], index: 6, kind: input, shape index: {}]
  %s7 = inlined_call_operand.hbm [shape: f32[16,128], index: 7, kind: output, shape index: {}]
  %s8 = sld [smem:[#allocation0]]
  $region50: #{tpu_custom_call.1} parent=0
    _
  %s10 = ssub.s32 1, %s8
  %s11 = scalar_select 0, %s10, %s8
  $region1: #{tpu_custom_call.1} parent=0
    #allocation2 [shape = 'u8[8192]{0}', space=vmem, size = 0x2000, scoped, tag = 'input window, operand 0, single buffered']
    #allocation3 [shape = 's32[1]{0}', space=sflag, size = 0x4, scoped, tag = 'scoped memory for tpu_custom_call.1']
    #allocation4 [shape = 's32[1]{0}', space=sflag, size = 0x4, scoped, tag = 'scoped memory for tpu_custom_call.1']
    #allocation5 [shape = 'u8[4096]{0}', space=vmem, size = 0x1000, scoped, tag = 'input window, operand 1, single buffered']
    #allocation6 [shape = 's32[1]{0}', space=sflag, size = 0x4, scoped, tag = 'scoped memory for tpu_custom_call.1']
    #allocation7 [shape = 'u8[8192]{0}', space=vmem, size = 0x2000, scoped, tag = 'input window, operand 3, single buffered']
    #allocation8 [shape = 'u8[8192]{0}', space=vmem, size = 0x2000, scoped, tag = 'output window, operand 0, single buffered']
    %12 = vsyncpa [#allocation3], 0
    %13 = vsyncpa [#allocation6], 0
    %14 = vsyncpa [#allocation4], 0
    // Predicated region
    $region2: #{tpu_custom_call.1} parent=1 // pred_check
      _
    $region3: #{tpu_custom_call.1} parent=1 // pred_check_branch
      %16 = sbr.rel (0) target = $region5
    $region4: #{tpu_custom_call.1} parent=1 // pred_region
      %s18 = ssub.s32 256, 256
      %19 = vsyncadd [#allocation3], %s18
      %s20 = sshll.u32 [#allocation2], 4
      %s21 = int_to_ptr.vmem [resolvable:$true] %s20
      %26 = dma.hbm_to_vmem [thread:$0]  %s0, 256, %s21, [#allocation3], 128, 128, 8
    $region5: #{tpu_custom_call.1} parent=1 // pred_fallthru
      _
    // Predicated region
    $region6: #{tpu_custom_call.1} parent=1 // pred_check
      _
    $region7: #{tpu_custom_call.1} parent=1 // pred_check_branch
      %28 = sbr.rel (0) target = $region9
    $region8: #{tpu_custom_call.1} parent=1 // pred_region
      %s30 = ssub.s32 128, 128
      %31 = vsyncadd [#allocation6], %s30
      %s32 = sshll.u32 [#allocation5], 4
      %s33 = int_to_ptr.vmem [resolvable:$true] %s32
      %38 = dma.hbm_to_vmem [thread:$0]  %s1, 128, %s33, [#allocation6], 64, 64, 4
    $region9: #{tpu_custom_call.1} parent=1 // pred_fallthru
      _
    // Predicated region
    $region10: #{tpu_custom_call.1} parent=1 // pred_check
      _
    $region11: #{tpu_custom_call.1} parent=1 // pred_check_branch
      %40 = sbr.rel (0) target = $region13
    $region12: #{tpu_custom_call.1} parent=1 // pred_region
      _
    $region13: #{tpu_custom_call.1} parent=1 // pred_fallthru
      _
    // Predicated region
    $region14: #{tpu_custom_call.1} parent=1 // pred_check
      _
    $region15: #{tpu_custom_call.1} parent=1 // pred_check_branch
      %42 = sbr.rel (0) target = $region17
    $region16: #{tpu_custom_call.1} parent=1 // pred_region
      %s44 = ssub.s32 256, 256
      %45 = vsyncadd [#allocation6], %s44
      %s46 = sshll.u32 [#allocation7], 4
      %s47 = int_to_ptr.vmem [resolvable:$true] %s46
      %52 = dma.hbm_to_vmem [thread:$0]  %s3, 256, %s47, [#allocation6], 64, 64, 4
    $region17: #{tpu_custom_call.1} parent=1 // pred_fallthru
      _
    // Predicated region
    $region18: #{tpu_custom_call.1} parent=1 // pred_check
      _
    $region19: #{tpu_custom_call.1} parent=1 // pred_check_branch
      %54 = sbr.rel (0) target = $region21
    $region20: #{tpu_custom_call.1} parent=1 // pred_region
      _
    $region21: #{tpu_custom_call.1} parent=1 // pred_fallthru
      _
    // Predicated region
    $region22: #{tpu_custom_call.1} parent=1 // pred_check
      _
    $region23: #{tpu_custom_call.1} parent=1 // pred_check_branch
      %56 = sbr.rel (0) target = $region25
    $region24: #{tpu_custom_call.1} parent=1 // pred_region
      _
    $region25: #{tpu_custom_call.1} parent=1 // pred_fallthru
      _
    // Predicated region
    $region26: #{tpu_custom_call.1} parent=1 // pred_check
      _
    $region27: #{tpu_custom_call.1} parent=1 // pred_check_branch
      %58 = sbr.rel (0) target = $region29
    $region28: #{tpu_custom_call.1} parent=1 // pred_region
      _
    $region29: #{tpu_custom_call.1} parent=1 // pred_fallthru
      _
    // Predicated region
    $region30: #{tpu_custom_call.1} parent=1 // pred_check
      _
    $region31: #{tpu_custom_call.1} parent=1 // pred_check_branch
      %60 = sbr.rel (0) target = $region33
    $region32: #{tpu_custom_call.1} parent=1 // pred_region
      %61 = dma.done [#allocation3], 256
    $region33: #{tpu_custom_call.1} parent=1 // pred_fallthru
      _
    // Predicated region
    $region34: #{tpu_custom_call.1} parent=1 // pred_check
      _
    $region35: #{tpu_custom_call.1} parent=1 // pred_check_branch
      %63 = sbr.rel (0) target = $region37
    $region36: #{tpu_custom_call.1} parent=1 // pred_region
      %64 = dma.done [#allocation6], 128
    $region37: #{tpu_custom_call.1} parent=1 // pred_fallthru
      _
    // Predicated region
    $region38: #{tpu_custom_call.1} parent=1 // pred_check
      _
    $region39: #{tpu_custom_call.1} parent=1 // pred_check_branch
      %66 = sbr.rel (0) target = $region41
    $region40: #{tpu_custom_call.1} parent=1 // pred_region
      %67 = dma.done [#allocation6], 256
    $region41: #{tpu_custom_call.1} parent=1 // pred_fallthru
      _
    %v69 = vld [vmem:[#allocation2] sm:$0xff]
    %v70 = vld [vmem:[#allocation2 + $0x8] sm:$0xff]
    %v71 = vpack.c.bf16 %v70, %v69
    %v72 = vld [vmem:[#allocation5] sm:$0xf]
    %v73 = vld [vmem:[#allocation5 + $0x4] sm:$0x3]
    %v74 = vld [vmem:[%s2] sm:$0x1]
    %v76 = vlaneseq
    %v77 = vshrl.u32 %v76, 7
    %v78 = vsub.s32 0, %v77
    %v79 = vrot.slane %v74, %v78
    %v83 = vunpack.c.l.b16 %v72
    %v84 = vunpack.c.l.b16 %v73
    %v85 = vpack.c.b16 %v84, %v83
    %vm86 = vcmask 97280
    %v88 = vsel %vm86, %v71, 0
    %vm90 = vcmask 1045504
    %v92 = vsel %vm90, %v85, 0
    %94 = vmatprep.subr.bf16.mxu0 0
    %95 = vmatpush1.bf16.msra.mxu0 %v92
    %96 = vmatprep.subr.bf16.mxu0 0
    %97 = vmatpush1.bf16.msra.mxu0 0
    %98 = vmatprep.subr.bf16.mxu0 0
    %99 = vmatpush1.bf16.msra.mxu0 0
    %100 = vmatprep.subr.bf16.mxu0 0
    %101 = vmatpush1.bf16.msra.mxu0 0
    %102 = vmatprep.subr.bf16.mxu0 0
    %103 = vmatpush1.bf16.msra.mxu0 0
    %104 = vmatprep.subr.bf16.mxu0 0
    %105 = vmatpush1.bf16.msra.mxu0 0
    %106 = vmatprep.subr.bf16.mxu0 0
    %107 = vmatpush1.bf16.msra.mxu0 0
    %108 = vmatprep.subr.bf16.mxu0 0
    %109 = vmatpush1.bf16.msra.mxu0 0
    %110 = vmatprep.subr.bf16.mxu0 0
    %111 = vmatpush1.bf16.msra.mxu0 0
    %112 = vmatprep.subr.bf16.mxu0 0
    %113 = vmatpush1.bf16.msra.mxu0 0
    %114 = vmatprep.subr.bf16.mxu0 0
    %115 = vmatpush1.bf16.msra.mxu0 0
    %116 = vmatprep.subr.bf16.mxu0 0
    %117 = vmatpush1.bf16.msra.mxu0 0
    %118 = vmatprep.subr.bf16.mxu0 0
    %119 = vmatpush1.bf16.msra.mxu0 0
    %120 = vmatprep.subr.bf16.mxu0 0
    %121 = vmatpush1.bf16.msra.mxu0 0
    %122 = vmatprep.subr.bf16.mxu0 0
    %123 = vmatpush1.bf16.msra.mxu0 0
    %124 = vmatprep.subr.bf16.mxu0 0
    %125 = vmatpush1.bf16.msra.mxu0 0
    %126 = vmatprep.mubr.bf16.mxu0 0
    %127 = vmatmul.mubr.bf16.gmra.mrb[0].mxu0 %v88
    %v128 = vpop.f32.mrb[0].mxu0
    %v129 = vadd.f32 %v79, %v128
    %v130 = vpop.f32.mrb[0].mxu0
    %v131 = vpop.f32.mrb[0].mxu0
    %v132 = vadd.f32 %v79, %v131
    %v133 = vpop.f32.mrb[0].mxu0
    %134 = vdwg.mxu0
    %v135 = vmax.f32 %v129, 0.0
    %v136 = vmax.f32 %v132, 0.0
    %v137 = vpack.c.bf16 %v136, %v135
    %v138 = vld [vmem:[#allocation7] sm:$0xf]
    %v139 = vld [vmem:[#allocation7 + $0x4] sm:$0xf]
    %v140 = vld [vmem:[#allocation7 + $0x8] sm:$0xf]
    %v141 = vld [vmem:[#allocation7 + $0xc] sm:$0xf]
    %v142 = vld [vmem:[%s4] sm:$0x1]
    %v144 = vlaneseq
    %v145 = vshrl.u32 %v144, 7
    %v146 = vsub.s32 0, %v145
    %v147 = vrot.slane %v142, %v146
    %v153 = vunpack.c.l.b16 %v138
    %v154 = vunpack.c.l.b16 %v139
    %v155 = vunpack.c.l.b16 %v140
    %v156 = vunpack.c.l.b16 %v141
    %v157 = vpack.c.b16 %v154, %v153
    %v158 = vpack.c.b16 %v156, %v155
    %vm161 = vcmask 261120
    %v163 = vsel %vm161, %v137, 0
    %165 = vmatprep.subr.bf16.mxu0 0
    %166 = vmatpush1.bf16.msra.mxu0 %v157
    %167 = vmatprep.subr.bf16.mxu0 0
    %168 = vmatpush1.bf16.msra.mxu0 %v158
    %169 = vmatprep.subr.bf16.mxu0 0
    %170 = vmatpush1.bf16.msra.mxu0 0
    %171 = vmatprep.subr.bf16.mxu0 0
    %172 = vmatpush1.bf16.msra.mxu0 0
    %173 = vmatprep.subr.bf16.mxu0 0
    %174 = vmatpush1.bf16.msra.mxu0 0
    %175 = vmatprep.subr.bf16.mxu0 0
    %176 = vmatpush1.bf16.msra.mxu0 0
    %177 = vmatprep.subr.bf16.mxu0 0
    %178 = vmatpush1.bf16.msra.mxu0 0
    %179 = vmatprep.subr.bf16.mxu0 0
    %180 = vmatpush1.bf16.msra.mxu0 0
    %181 = vmatprep.subr.bf16.mxu0 0
    %182 = vmatpush1.bf16.msra.mxu0 0
    %183 = vmatprep.subr.bf16.mxu0 0
    %184 = vmatpush1.bf16.msra.mxu0 0
    %185 = vmatprep.subr.bf16.mxu0 0
    %186 = vmatpush1.bf16.msra.mxu0 0
    %187 = vmatprep.subr.bf16.mxu0 0
    %188 = vmatpush1.bf16.msra.mxu0 0
    %189 = vmatprep.subr.bf16.mxu0 0
    %190 = vmatpush1.bf16.msra.mxu0 0
    %191 = vmatprep.subr.bf16.mxu0 0
    %192 = vmatpush1.bf16.msra.mxu0 0
    %193 = vmatprep.subr.bf16.mxu0 0
    %194 = vmatpush1.bf16.msra.mxu0 0
    %195 = vmatprep.subr.bf16.mxu0 0
    %196 = vmatpush1.bf16.msra.mxu0 0
    %197 = vmatprep.mubr.bf16.mxu0 0
    %198 = vmatmul.mubr.bf16.gmra.mrb[0].mxu0 %v163
    %v199 = vpop.f32.mrb[0].mxu0
    %v200 = vadd.f32 %v147, %v199
    %v201 = vpop.f32.mrb[0].mxu0
    %v202 = vpop.f32.mrb[0].mxu0
    %v203 = vadd.f32 %v147, %v202
    %v204 = vpop.f32.mrb[0].mxu0
    %205 = vdwg.mxu0
    %v206 = vmax.f32 %v200, 0.0
    %v207 = vmax.f32 %v203, 0.0
    %v208 = vadd.f32 %v206, %v135
    %v209 = vadd.f32 %v207, %v136
    %v210 = vpack.c.bf16 %v209, %v208
    %v211 = vld [vmem:[%s5] sm:$0xf]
    %v212 = vld [vmem:[%s5 + $0x4] sm:$0xf]
    %v213 = vld [vmem:[%s5 + $0x8] sm:$0xf]
    %v214 = vld [vmem:[%s5 + $0xc] sm:$0xf]
    %v215 = vld [vmem:[%s6] sm:$0x1]
    %v217 = vlaneseq
    %v218 = vshrl.u32 %v217, 7
    %v219 = vsub.s32 0, %v218
    %v220 = vrot.slane %v215, %v219
    %v226 = vunpack.c.l.b16 %v211
    %v227 = vunpack.c.l.b16 %v212
    %v228 = vunpack.c.l.b16 %v213
    %v229 = vunpack.c.l.b16 %v214
    %v230 = vpack.c.b16 %v227, %v226
    %v231 = vpack.c.b16 %v229, %v228
    %v235 = vsel %vm161, %v210, 0
    %237 = vmatprep.subr.bf16.mxu0 0
    %238 = vmatpush1.bf16.msra.mxu0 %v230
    %239 = vmatprep.subr.bf16.mxu0 0
    %240 = vmatpush1.bf16.msra.mxu0 %v231
    %241 = vmatprep.subr.bf16.mxu0 0
    %242 = vmatpush1.bf16.msra.mxu0 0
    %243 = vmatprep.subr.bf16.mxu0 0
    %244 = vmatpush1.bf16.msra.mxu0 0
    %245 = vmatprep.subr.bf16.mxu0 0
    %246 = vmatpush1.bf16.msra.mxu0 0
    %247 = vmatprep.subr.bf16.mxu0 0
    %248 = vmatpush1.bf16.msra.mxu0 0
    %249 = vmatprep.subr.bf16.mxu0 0
    %250 = vmatpush1.bf16.msra.mxu0 0
    %251 = vmatprep.subr.bf16.mxu0 0
    %252 = vmatpush1.bf16.msra.mxu0 0
    %253 = vmatprep.subr.bf16.mxu0 0
    %254 = vmatpush1.bf16.msra.mxu0 0
    %255 = vmatprep.subr.bf16.mxu0 0
    %256 = vmatpush1.bf16.msra.mxu0 0
    %257 = vmatprep.subr.bf16.mxu0 0
    %258 = vmatpush1.bf16.msra.mxu0 0
    %259 = vmatprep.subr.bf16.mxu0 0
    %260 = vmatpush1.bf16.msra.mxu0 0
    %261 = vmatprep.subr.bf16.mxu0 0
    %262 = vmatpush1.bf16.msra.mxu0 0
    %263 = vmatprep.subr.bf16.mxu0 0
    %264 = vmatpush1.bf16.msra.mxu0 0
    %265 = vmatprep.subr.bf16.mxu0 0
    %266 = vmatpush1.bf16.msra.mxu0 0
    %267 = vmatprep.subr.bf16.mxu0 0
    %268 = vmatpush1.bf16.msra.mxu0 0
    %269 = vmatprep.mubr.bf16.mxu0 0
    %270 = vmatmul.mubr.bf16.gmra.mrb[0].mxu0 %v235
    %v271 = vpop.f32.mrb[0].mxu0
    %v272 = vadd.f32 %v220, %v271
    %v273 = vpop.f32.mrb[0].mxu0
    %v274 = vpop.f32.mrb[0].mxu0
    %v275 = vadd.f32 %v220, %v274
    %v276 = vpop.f32.mrb[0].mxu0
    %277 = vdwg.mxu0
    %278 = vst [vmem:[#allocation8] sm:$0xff] %v272
    %279 = vst [vmem:[#allocation8 + $0x8] sm:$0xff] %v275
    // Predicated region
    $region42: #{tpu_custom_call.1} parent=1 // pred_check
      _
    $region43: #{tpu_custom_call.1} parent=1 // pred_check_branch
      %281 = sbr.rel (0) target = $region45
    $region44: #{tpu_custom_call.1} parent=1 // pred_region
      %s283 = ssub.s32 256, 256
      %284 = vsyncadd [#allocation4], %s283
      %s285 = sshll.u32 [#allocation8], 4
      %s286 = int_to_ptr.vmem [resolvable:$true] %s285
      %291 = dma.vmem_to_hbm [thread:$0]  %s286, 256, %s7, [#allocation4], 128, 128, 8
    $region45: #{tpu_custom_call.1} parent=1 // pred_fallthru
      _
    // Predicated region
    $region46: #{tpu_custom_call.1} parent=1 // pred_check
      _
    $region47: #{tpu_custom_call.1} parent=1 // pred_check_branch
      %293 = sbr.rel (0) target = $region49
    $region48: #{tpu_custom_call.1} parent=1 // pred_region
      %294 = dma.done [#allocation4], 256
    $region49: #{tpu_custom_call.1} parent=1 // pred_fallthru
      _
    %295 = vsyncpa [#allocation3], 1
    %296 = vsyncpa [#allocation6], 1
    %297 = vsyncpa [#allocation4], 1

</llo_original>
